<compile_context>
chip_gen: v7x
topology: tpu7x:2x2x1
jax: 0.10.0
libtpu: 0.0.40
codegen_flags: <defaults>
</compile_context>

<pallas_src>
import jax
import jax.numpy as jnp
from jax.experimental import pallas as pl
from jax.experimental.pallas import tpu as pltpu

IN_FEATURES = 128 * 4 * 4      # 2048
HIDDEN = 128
OUT_FEATURES = 6
OUT_PADDED = 128               # lane-dense fc2 width inside the kernel
NEG_BIG = -1e30                # pad-column bias -> exp() == 0 exactly


def _round_up(v, m):
    return ((v + m - 1) // m) * m


def _fc_kernel(x_ref, w1_ref, b1_ref, w2_ref, b2_ref, o_ref):
    # x tile arrives f32 straight from HBM; cast to bf16 in-kernel so the
    # dominant HBM stream is read once (no separate XLA cast pass).
    x = x_ref[...].astype(jnp.bfloat16)                         # (TB, 2048)
    # fc1: bf16 MXU matmul, f32 accumulation, bias, ReLU.
    h = jnp.dot(x, w1_ref[...], preferred_element_type=jnp.float32)
    h = jnp.maximum(h + b1_ref[...], 0.0)                       # (TB, 128) f32
    # fc2 padded to 128 lanes, bf16 weights, f32 accumulation; pad biases -1e30.
    logits = jnp.dot(h.astype(jnp.bfloat16), w2_ref[...],
                     preferred_element_type=jnp.float32)
    logits = logits + b2_ref[...]                               # (TB, 128) f32
    # Numerically stable softmax over the (padded) lane dimension.
    m = jnp.max(logits, axis=-1, keepdims=True)
    e = jnp.exp(logits - m)                                     # pad lanes -> 0
    denom = jnp.sum(e, axis=-1, keepdims=True)                  # >= 1, no div0
    probs = e * pl.reciprocal(denom, approx=True)               # EUP slot
    # Store only the 6 real classes: lane-sub-width store, but this is the
    # minor stream (B*24 B) and store slots have slack under the input DMA.
    o_ref[...] = probs[:, :OUT_FEATURES]


def prepare_params(w1, b1, w2, b2):
    """One-time parameter prep (hoisted out of the per-step forward).

    w1: (128, 2048) PyTorch fc1.weight (out x in);  b1: (128,)
    w2: (6, 128)    PyTorch fc2.weight (out x in);  b2: (6,)
    Returns (w1_t_bf16, b1_row_f32, w2_padded_bf16, b2_padded_f32).
    """
    w1_t = jnp.asarray(w1, jnp.float32).T.astype(jnp.bfloat16)        # (2048, 128)
    b1_r = jnp.asarray(b1, jnp.float32).reshape(1, HIDDEN)
    w2_t = jnp.asarray(w2, jnp.float32).T                             # (128, 6)
    w2_p = jnp.zeros((HIDDEN, OUT_PADDED), jnp.float32)
    w2_p = w2_p.at[:, :OUT_FEATURES].set(w2_t).astype(jnp.bfloat16)   # bf16 MXU path
    b2_p = jnp.full((1, OUT_PADDED), NEG_BIG, jnp.float32)
    b2_p = b2_p.at[0, :OUT_FEATURES].set(jnp.asarray(b2, jnp.float32))
    return w1_t, b1_r, w2_p, b2_p


@jax.jit
def fullyconnected_forward(x_nchw, w1_t, b1_r, w2_p, b2_p):
    """x_nchw: (B, 128, 4, 4) float32. Returns (B, 6) softmax probabilities."""
    B = x_nchw.shape[0]
    # torch .view(B, -1) on contiguous NCHW == row-major reshape (free in XLA).
    x2 = x_nchw.reshape(B, IN_FEATURES)                    # stays f32

    # Batch tile: multiple of 8 (f32 sublane), capped at 1024 rows so
    # 2x 8 MiB f32 x buffers + weights + temps fit a 32 MiB scoped-VMEM
    # budget on every generation. For large B aim for >= 2 grid steps so the
    # "parallel" axis can shard across both TensorCores on v7x.
    if B <= 8:
        tb = 8
    else:
        tb = min(1024, _round_up((B + 1) // 2, 8))
    grid = (pl.cdiv(B, tb),)

    cost = pl.CostEstimate(
        flops=2 * B * IN_FEATURES * HIDDEN + 2 * B * HIDDEN * OUT_PADDED,
        transcendentals=B * OUT_PADDED,
        bytes_accessed=(B * IN_FEATURES * 4            # x (f32, read once)
                        + IN_FEATURES * HIDDEN * 2     # w1 (bf16)
                        + HIDDEN * OUT_PADDED * 2      # w2 (bf16, padded)
                        + B * OUT_FEATURES * 4),       # output (f32, 6 cols)
    )

    out = pl.pallas_call(
        _fc_kernel,
        out_shape=jax.ShapeDtypeStruct((B, OUT_FEATURES), jnp.float32),
        grid=grid,
        in_specs=[
            pl.BlockSpec((tb, IN_FEATURES), lambda i: (i, 0)),      # x (streamed)
            pl.BlockSpec((IN_FEATURES, HIDDEN), lambda i: (0, 0)),  # w1 (resident)
            pl.BlockSpec((1, HIDDEN), lambda i: (0, 0)),            # b1
            pl.BlockSpec((HIDDEN, OUT_PADDED), lambda i: (0, 0)),   # w2 (padded)
            pl.BlockSpec((1, OUT_PADDED), lambda i: (0, 0)),        # b2 (padded)
        ],
        # Last block dim (6) == full array dim -> legal; kills the post-kernel slice.
        out_specs=pl.BlockSpec((tb, OUT_FEATURES), lambda i: (i, 0)),
        compiler_params=pltpu.CompilerParams(
            dimension_semantics=("parallel",),
            # 32 MiB: raises v5e's 16 MiB default, matches v6e/v7x defaults,
            # safely under v7x's 64 MiB physical VMEM.
            vmem_limit_bytes=32 * 1024 * 1024,
        ),
        cost_estimate=cost,
    )(x2, w1_t, b1_r, w2_p, b2_p)

    return out


def _init_params(key):
    """Deterministic init mimicking PyTorch nn.Linear default (U[-1/sqrt(fan_in), ...])."""
    k1, k2, k3, k4 = jax.random.split(key, 4)
    bound1 = 1.0 / jnp.sqrt(IN_FEATURES)
    w1 = jax.random.uniform(k1, (HIDDEN, IN_FEATURES), jnp.float32, -bound1, bound1)
    b1 = jax.random.uniform(k2, (HIDDEN,), jnp.float32, -bound1, bound1)
    bound2 = 1.0 / jnp.sqrt(HIDDEN)
    w2 = jax.random.uniform(k3, (OUT_FEATURES, HIDDEN), jnp.float32, -bound2, bound2)
    b2 = jax.random.uniform(k4, (OUT_FEATURES,), jnp.float32, -bound2, bound2)
    return w1, b1, w2, b2


def _reference_forward(x_nchw, w1, b1, w2, b2):
    """Pure-JAX f32 reference for correctness checking."""
    B = x_nchw.shape[0]
    x2 = x_nchw.reshape(B, -1)
    l1 = jnp.maximum(x2 @ w1.T + b1, 0.0)
    logits = l1 @ w2.T + b2
    return jax.nn.softmax(logits, axis=1)


if __name__ == "__main__":
    key = jax.random.PRNGKey(0)
    kx, kp = jax.random.split(key)
    # Input shape implied by fc1 (128 * 4 * 4 input features); small batch.
    x = jax.random.normal(kx, (2, 128, 4, 4), jnp.float32)
    w1, b1, w2, b2 = _init_params(kp)

    params = prepare_params(w1, b1, w2, b2)
    out = jax.block_until_ready(fullyconnected_forward(x, *params))

    ref = _reference_forward(x, w1, b1, w2, b2)
    assert out.shape == (2, OUT_FEATURES)
    # Tolerance loosened vs pure-f32 reference: fc1/fc2 run bf16 on the MXU
    # (f32 accumulation) and the softmax denom uses the EUP approx reciprocal.
    assert jnp.allclose(out, ref, atol=2e-2, rtol=2e-2), "mismatch vs reference"
    # Approx reciprocal -> rows sum to 1 within the EUP rcp relative error.
    assert jnp.allclose(jnp.sum(out, axis=1), 1.0, atol=5e-3), "softmax rows must sum to ~1"

    print("KERNEL_OK")
</pallas_src>

<mosaic_0001>
module attributes {stable_mosaic.version = 11 : i64} {
  func.func @_fc_kernel(%arg0: i32, %arg1: memref<8x2048xf32, #tpu.memory_space<vmem>>, %arg2: memref<2048x128xbf16, #tpu.memory_space<vmem>>, %arg3: memref<1x128xf32, #tpu.memory_space<vmem>>, %arg4: memref<128x128xbf16, #tpu.memory_space<vmem>>, %arg5: memref<1x128xf32, #tpu.memory_space<vmem>>, %arg6: memref<8x6xf32, #tpu.memory_space<vmem>>) attributes {dimension_semantics = [#tpu.dimension_semantics<parallel>], iteration_bounds = array<i64: 1>, scalar_prefetch = 0 : i64, scratch_operands = 0 : i64, tpu.core_type = #tpu.core_type<tc>, window_params = [{transform_indices = @transform_0, window_bounds = array<i64: 8, 2048>}, {pipeline_mode = #tpu.pipeline_mode<synchronous>, transform_indices = @transform_1, window_bounds = array<i64: 2048, 128>}, {pipeline_mode = #tpu.pipeline_mode<synchronous>, transform_indices = @transform_2, window_bounds = array<i64: 1, 128>}, {pipeline_mode = #tpu.pipeline_mode<synchronous>, transform_indices = @transform_3, window_bounds = array<i64: 128, 128>}, {pipeline_mode = #tpu.pipeline_mode<synchronous>, transform_indices = @transform_4, window_bounds = array<i64: 1, 128>}, {transform_indices = @transform_5, window_bounds = array<i64: 8, 6>}]} {
    %c0 = arith.constant 0 : index
    %c0_0 = arith.constant 0 : index
    %0 = vector.load %arg1[%c0, %c0_0] : memref<8x2048xf32, #tpu.memory_space<vmem>>, vector<8x2048xf32>
    %1 = arith.truncf %0 : vector<8x2048xf32> to vector<8x2048xbf16>
    %c0_1 = arith.constant 0 : index
    %c0_2 = arith.constant 0 : index
    %2 = vector.load %arg2[%c0_1, %c0_2] : memref<2048x128xbf16, #tpu.memory_space<vmem>>, vector<2048x128xbf16>
    %cst = arith.constant dense<0.000000e+00> : vector<8x128xf32>
    %3 = tpu.matmul %1, %2, %cst {dimension_numbers = #tpu.dot_dimension_numbers<[1], [0], [0], [1], [0, 0, 1, 1], [], []>} : vector<8x2048xbf16>, vector<2048x128xbf16>, vector<8x128xf32> -> vector<8x128xf32>
    %c0_3 = arith.constant 0 : index
    %c0_4 = arith.constant 0 : index
    %4 = vector.load %arg3[%c0_3, %c0_4] : memref<1x128xf32, #tpu.memory_space<vmem>>, vector<1x128xf32>
    %5 = vector.broadcast %4 : vector<1x128xf32> to vector<8x128xf32>
    %6 = arith.addf %3, %5 : vector<8x128xf32>
    %cst_5 = arith.constant 0.000000e+00 : f32
    %7 = vector.broadcast %cst_5 : f32 to vector<8x128xf32>
    %8 = arith.maximumf %6, %7 : vector<8x128xf32>
    %9 = arith.truncf %8 : vector<8x128xf32> to vector<8x128xbf16>
    %c0_6 = arith.constant 0 : index
    %c0_7 = arith.constant 0 : index
    %10 = vector.load %arg4[%c0_6, %c0_7] : memref<128x128xbf16, #tpu.memory_space<vmem>>, vector<128x128xbf16>
    %cst_8 = arith.constant dense<0.000000e+00> : vector<8x128xf32>
    %11 = tpu.matmul %9, %10, %cst_8 {dimension_numbers = #tpu.dot_dimension_numbers<[1], [0], [0], [1], [0, 0, 1, 1], [], []>} : vector<8x128xbf16>, vector<128x128xbf16>, vector<8x128xf32> -> vector<8x128xf32>
    %c0_9 = arith.constant 0 : index
    %c0_10 = arith.constant 0 : index
    %12 = vector.load %arg5[%c0_9, %c0_10] : memref<1x128xf32, #tpu.memory_space<vmem>>, vector<1x128xf32>
    %13 = vector.broadcast %12 : vector<1x128xf32> to vector<8x128xf32>
    %14 = arith.addf %11, %13 : vector<8x128xf32>
    %cst_11 = arith.constant dense<0xFF800000> : vector<8xf32>
    %15 = vector.multi_reduction <maximumf>, %14, %cst_11 [1] : vector<8x128xf32> to vector<8xf32>
    %16 = vector.shape_cast %15 : vector<8xf32> to vector<8x1xf32>
    %17 = vector.broadcast %16 : vector<8x1xf32> to vector<8x128xf32>
    %18 = arith.subf %14, %17 : vector<8x128xf32>
    %19 = math.exp %18 : vector<8x128xf32>
    %cst_12 = arith.constant dense<0.000000e+00> : vector<8xf32>
    %20 = vector.multi_reduction <add>, %19, %cst_12 [1] : vector<8x128xf32> to vector<8xf32>
    %21 = vector.shape_cast %20 : vector<8xf32> to vector<8x1xf32>
    %22 = tpu.reciprocal %21 {approx = true} : vector<8x1xf32> -> vector<8x1xf32>
    %23 = vector.broadcast %22 : vector<8x1xf32> to vector<8x128xf32>
    %24 = arith.mulf %19, %23 : vector<8x128xf32>
    %25 = vector.extract_strided_slice %24 {offsets = [0, 0], sizes = [8, 6], strides = [1, 1]} : vector<8x128xf32> to vector<8x6xf32>
    %c0_13 = arith.constant 0 : index
    %c0_14 = arith.constant 0 : index
    %26 = vector.load %arg6[%c0_13, %c0_14] : memref<8x6xf32, #tpu.memory_space<vmem>>, vector<8x6xf32>
    tpu.vector_store %arg6[%c0_13, %c0_14], %25 {strides = array<i32>} : memref<8x6xf32, #tpu.memory_space<vmem>>, vector<8x6xf32>,
    return
  }
  func.func @transform_0(%arg0: i32) -> (i32, i32) {
    %c0_i32 = arith.constant 0 : i32
    %c0_i32_0 = arith.constant 0 : i32
    return %arg0, %c0_i32 : i32, i32
  }
  func.func @transform_1(%arg0: i32) -> (i32, i32) {
    %c0_i32 = arith.constant 0 : i32
    %c0_i32_0 = arith.constant 0 : i32
    %c0_i32_1 = arith.constant 0 : i32
    return %c0_i32, %c0_i32_0 : i32, i32
  }
  func.func @transform_2(%arg0: i32) -> (i32, i32) {
    %c0_i32 = arith.constant 0 : i32
    %c0_i32_0 = arith.constant 0 : i32
    %c0_i32_1 = arith.constant 0 : i32
    return %c0_i32, %c0_i32_0 : i32, i32
  }
  func.func @transform_3(%arg0: i32) -> (i32, i32) {
    %c0_i32 = arith.constant 0 : i32
    %c0_i32_0 = arith.constant 0 : i32
    %c0_i32_1 = arith.constant 0 : i32
    return %c0_i32, %c0_i32_0 : i32, i32
  }
  func.func @transform_4(%arg0: i32) -> (i32, i32) {
    %c0_i32 = arith.constant 0 : i32
    %c0_i32_0 = arith.constant 0 : i32
    %c0_i32_1 = arith.constant 0 : i32
    return %c0_i32, %c0_i32_0 : i32, i32
  }
  func.func @transform_5(%arg0: i32) -> (i32, i32) {
    %c0_i32 = arith.constant 0 : i32
    %c0_i32_0 = arith.constant 0 : i32
    return %arg0, %c0_i32 : i32, i32
  }
}

</mosaic_0001>

<llo_original>
// kernel: fullyconnected_forward.1
$region0: #{fullyconnected_forward.1}
  #allocation0 [shape = 'u32[]', space=smem, size = 0x4, offset = 0x4, fixed_abs, tag = 'smem constant byte address 0x4 - core index']
  #allocation1 [shape = 'u32[144,128]{1,0:T(1,128)}', space=vmem, size = 0x12000, scoped, tag = 'internal scratch']
  %s0 = inlined_call_operand.vmem [shape: f32[2,2048], index: 0, kind: input, shape index: {}]
  %s1 = inlined_call_operand.vmem [shape: bf16[2048,128], index: 1, kind: input, shape index: {}]
  %s2 = inlined_call_operand.vmem [shape: f32[1,128], index: 2, kind: input, shape index: {}]
  %s3 = inlined_call_operand.vmem [shape: bf16[128,128], index: 3, kind: input, shape index: {}]
  %s4 = inlined_call_operand.vmem [shape: f32[1,128], index: 4, kind: input, shape index: {}]
  %s5 = inlined_call_operand.hbm [shape: f32[2,6], index: 5, kind: output, shape index: {}]
  %s6 = sld [smem:[#allocation0]]
  $region30: #{fullyconnected_forward.1} parent=0
    _
  %s8 = ssub.s32 1, %s6
  %s9 = scalar_select 0, %s8, %s6
  $region1: #{fullyconnected_forward.1} parent=0
    #allocation2 [shape = 'u8[4096]{0}', space=vmem, size = 0x1000, scoped, tag = 'output window, operand 0, single buffered']
    #allocation3 [shape = 's32[1]{0}', space=sflag, size = 0x4, scoped, tag = 'scoped memory for fullyconnected_forward.1']
    %10 = vsyncpa [#allocation3], 0
    // Predicated region
    $region2: #{fullyconnected_forward.1} parent=1 // pred_check
      _
    $region3: #{fullyconnected_forward.1} parent=1 // pred_check_branch
      %12 = sbr.rel (0) target = $region5
    $region4: #{fullyconnected_forward.1} parent=1 // pred_region
      _
    $region5: #{fullyconnected_forward.1} parent=1 // pred_fallthru
      _
    // Predicated region
    $region6: #{fullyconnected_forward.1} parent=1 // pred_check
      _
    $region7: #{fullyconnected_forward.1} parent=1 // pred_check_branch
      %14 = sbr.rel (0) target = $region9
    $region8: #{fullyconnected_forward.1} parent=1 // pred_region
      _
    $region9: #{fullyconnected_forward.1} parent=1 // pred_fallthru
      _
    // Predicated region
    $region10: #{fullyconnected_forward.1} parent=1 // pred_check
      _
    $region11: #{fullyconnected_forward.1} parent=1 // pred_check_branch
      %16 = sbr.rel (0) target = $region13
    $region12: #{fullyconnected_forward.1} parent=1 // pred_region
      _
    $region13: #{fullyconnected_forward.1} parent=1 // pred_fallthru
      _
    // Predicated region
    $region14: #{fullyconnected_forward.1} parent=1 // pred_check
      _
    $region15: #{fullyconnected_forward.1} parent=1 // pred_check_branch
      %18 = sbr.rel (0) target = $region17
    $region16: #{fullyconnected_forward.1} parent=1 // pred_region
      _
    $region17: #{fullyconnected_forward.1} parent=1 // pred_fallthru
      _
    // Predicated region
    $region18: #{fullyconnected_forward.1} parent=1 // pred_check
      _
    $region19: #{fullyconnected_forward.1} parent=1 // pred_check_branch
      %20 = sbr.rel (0) target = $region21
    $region20: #{fullyconnected_forward.1} parent=1 // pred_region
      _
    $region21: #{fullyconnected_forward.1} parent=1 // pred_fallthru
      _
    %v22 = vld [vmem:[%s0] sm:$0xff]
    %v23 = vld [vmem:[%s0 + $0x8] sm:$0xff]
    %v24 = vld [vmem:[%s0 + $0x10] sm:$0xff]
    %v25 = vld [vmem:[%s0 + $0x18] sm:$0xff]
    %v26 = vld [vmem:[%s0 + $0x20] sm:$0xff]
    %v27 = vld [vmem:[%s0 + $0x28] sm:$0xff]
    %v28 = vld [vmem:[%s0 + $0x30] sm:$0xff]
    %v29 = vld [vmem:[%s0 + $0x38] sm:$0xff]
    %v30 = vld [vmem:[%s0 + $0x40] sm:$0xff]
    %v31 = vld [vmem:[%s0 + $0x48] sm:$0xff]
    %v32 = vld [vmem:[%s0 + $0x50] sm:$0xff]
    %v33 = vld [vmem:[%s0 + $0x58] sm:$0xff]
    %v34 = vld [vmem:[%s0 + $0x60] sm:$0xff]
    %v35 = vld [vmem:[%s0 + $0x68] sm:$0xff]
    %v36 = vld [vmem:[%s0 + $0x70] sm:$0xff]
    %v37 = vld [vmem:[%s0 + $0x78] sm:$0xff]
    %v54 = vcombine.low %v22, %v26
    %v55 = vcombine.high %v22, %v26
    %v56 = vcombine.low %v30, %v34
    %v57 = vcombine.high %v30, %v34
    %v59 = vunpack.c.l.s4 1983009808
    %v60 = vunpack.c.0.s8 %v59
    %v61 = vlaneseq
    %v62 = vshrl.u32 %v61, 7
    %v63 = vsub.s32 %v60, %v62
    %v64 = vrot.slane %v54, %v63
    %v66 = vunpack.c.l.s4 1983009808
    %v67 = vunpack.c.0.s8 %v66
    %v68 = vlaneseq
    %v69 = vshrl.u32 %v68, 7
    %v70 = vsub.s32 %v67, %v69
    %v71 = vrot.slane %v55, %v70
    %v73 = vunpack.c.l.s4 1983009808
    %v74 = vunpack.c.0.s8 %v73
    %v75 = vlaneseq
    %v76 = vshrl.u32 %v75, 7
    %v77 = vsub.s32 %v74, %v76
    %v78 = vrot.slane %v56, %v77
    %v80 = vunpack.c.l.s4 1983009808
    %v81 = vunpack.c.0.s8 %v80
    %v82 = vlaneseq
    %v83 = vshrl.u32 %v82, 7
    %v84 = vsub.s32 %v81, %v83
    %v85 = vrot.slane %v57, %v84
    %v86 = vcombine.low %v64, %v78
    %v87 = vcombine.high %v64, %v78
    %v88 = vcombine.low %v71, %v85
    %v89 = vcombine.high %v71, %v85
    %v90 = vcombine.low %v23, %v27
    %v91 = vcombine.high %v23, %v27
    %v92 = vcombine.low %v31, %v35
    %v93 = vcombine.high %v31, %v35
    %v95 = vunpack.c.l.s4 1983009808
    %v96 = vunpack.c.0.s8 %v95
    %v97 = vlaneseq
    %v98 = vshrl.u32 %v97, 7
    %v99 = vsub.s32 %v96, %v98
    %v100 = vrot.slane %v90, %v99
    %v102 = vunpack.c.l.s4 1983009808
    %v103 = vunpack.c.0.s8 %v102
    %v104 = vlaneseq
    %v105 = vshrl.u32 %v104, 7
    %v106 = vsub.s32 %v103, %v105
    %v107 = vrot.slane %v91, %v106
    %v109 = vunpack.c.l.s4 1983009808
    %v110 = vunpack.c.0.s8 %v109
    %v111 = vlaneseq
    %v112 = vshrl.u32 %v111, 7
    %v113 = vsub.s32 %v110, %v112
    %v114 = vrot.slane %v92, %v113
    %v116 = vunpack.c.l.s4 1983009808
    %v117 = vunpack.c.0.s8 %v116
    %v118 = vlaneseq
    %v119 = vshrl.u32 %v118, 7
    %v120 = vsub.s32 %v117, %v119
    %v121 = vrot.slane %v93, %v120
    %v122 = vcombine.low %v100, %v114
    %v123 = vcombine.high %v100, %v114
    %v124 = vcombine.low %v107, %v121
    %v125 = vcombine.high %v107, %v121
    %v126 = vcombine.low %v24, %v28
    %v127 = vcombine.high %v24, %v28
    %v128 = vcombine.low %v32, %v36
    %v129 = vcombine.high %v32, %v36
    %v131 = vunpack.c.l.s4 1983009808
    %v132 = vunpack.c.0.s8 %v131
    %v133 = vlaneseq
    %v134 = vshrl.u32 %v133, 7
    %v135 = vsub.s32 %v132, %v134
    %v136 = vrot.slane %v126, %v135
    %v138 = vunpack.c.l.s4 1983009808
    %v139 = vunpack.c.0.s8 %v138
    %v140 = vlaneseq
    %v141 = vshrl.u32 %v140, 7
    %v142 = vsub.s32 %v139, %v141
    %v143 = vrot.slane %v127, %v142
    %v145 = vunpack.c.l.s4 1983009808
    %v146 = vunpack.c.0.s8 %v145
    %v147 = vlaneseq
    %v148 = vshrl.u32 %v147, 7
    %v149 = vsub.s32 %v146, %v148
    %v150 = vrot.slane %v128, %v149
    %v152 = vunpack.c.l.s4 1983009808
    %v153 = vunpack.c.0.s8 %v152
    %v154 = vlaneseq
    %v155 = vshrl.u32 %v154, 7
    %v156 = vsub.s32 %v153, %v155
    %v157 = vrot.slane %v129, %v156
    %v158 = vcombine.low %v136, %v150
    %v159 = vcombine.high %v136, %v150
    %v160 = vcombine.low %v143, %v157
    %v161 = vcombine.high %v143, %v157
    %v162 = vcombine.low %v25, %v29
    %v163 = vcombine.high %v25, %v29
    %v164 = vcombine.low %v33, %v37
    %v165 = vcombine.high %v33, %v37
    %v167 = vunpack.c.l.s4 1983009808
    %v168 = vunpack.c.0.s8 %v167
    %v169 = vlaneseq
    %v170 = vshrl.u32 %v169, 7
    %v171 = vsub.s32 %v168, %v170
    %v172 = vrot.slane %v162, %v171
    %v174 = vunpack.c.l.s4 1983009808
    %v175 = vunpack.c.0.s8 %v174
    %v176 = vlaneseq
    %v177 = vshrl.u32 %v176, 7
    %v178 = vsub.s32 %v175, %v177
    %v179 = vrot.slane %v163, %v178
    %v181 = vunpack.c.l.s4 1983009808
    %v182 = vunpack.c.0.s8 %v181
    %v183 = vlaneseq
    %v184 = vshrl.u32 %v183, 7
    %v185 = vsub.s32 %v182, %v184
    %v186 = vrot.slane %v164, %v185
    %v188 = vunpack.c.l.s4 1983009808
    %v189 = vunpack.c.0.s8 %v188
    %v190 = vlaneseq
    %v191 = vshrl.u32 %v190, 7
    %v192 = vsub.s32 %v189, %v191
    %v193 = vrot.slane %v165, %v192
    %v194 = vcombine.low %v172, %v186
    %v195 = vcombine.high %v172, %v186
    %v196 = vcombine.low %v179, %v193
    %v197 = vcombine.high %v179, %v193
    %v214 = vpack.c.bf16 %v86, %v86
    %v215 = vpack.c.bf16 %v87, %v87
    %v216 = vpack.c.bf16 %v88, %v88
    %v217 = vpack.c.bf16 %v89, %v89
    %v218 = vpack.c.bf16 %v122, %v122
    %v219 = vpack.c.bf16 %v123, %v123
    %v220 = vpack.c.bf16 %v124, %v124
    %v221 = vpack.c.bf16 %v125, %v125
    %v222 = vpack.c.bf16 %v158, %v158
    %v223 = vpack.c.bf16 %v159, %v159
    %v224 = vpack.c.bf16 %v160, %v160
    %v225 = vpack.c.bf16 %v161, %v161
    %v226 = vpack.c.bf16 %v194, %v194
    %v227 = vpack.c.bf16 %v195, %v195
    %v228 = vpack.c.bf16 %v196, %v196
    %v229 = vpack.c.bf16 %v197, %v197
    %v230 = vld [vmem:[%s1] sm:$0xf]
    %v231 = vld [vmem:[%s1 + $0x4] sm:$0xf]
    %v232 = vld [vmem:[%s1 + $0x8] sm:$0xf]
    %v233 = vld [vmem:[%s1 + $0xc] sm:$0xf]
    %v234 = vld [vmem:[%s1 + $0x10] sm:$0xf]
    %v235 = vld [vmem:[%s1 + $0x14] sm:$0xf]
    %v236 = vld [vmem:[%s1 + $0x18] sm:$0xf]
    %v237 = vld [vmem:[%s1 + $0x1c] sm:$0xf]
    %v238 = vld [vmem:[%s1 + $0x20] sm:$0xf]
    %v239 = vld [vmem:[%s1 + $0x24] sm:$0xf]
    %v240 = vld [vmem:[%s1 + $0x28] sm:$0xf]
    %v241 = vld [vmem:[%s1 + $0x2c] sm:$0xf]
    %v242 = vld [vmem:[%s1 + $0x30] sm:$0xf]
    %v243 = vld [vmem:[%s1 + $0x34] sm:$0xf]
    %v244 = vld [vmem:[%s1 + $0x38] sm:$0xf]
    %v245 = vld [vmem:[%s1 + $0x3c] sm:$0xf]
    %v246 = vld [vmem:[%s1 + $0x40] sm:$0xf]
    %v247 = vld [vmem:[%s1 + $0x44] sm:$0xf]
    %v248 = vld [vmem:[%s1 + $0x48] sm:$0xf]
    %v249 = vld [vmem:[%s1 + $0x4c] sm:$0xf]
    %v250 = vld [vmem:[%s1 + $0x50] sm:$0xf]
    %v251 = vld [vmem:[%s1 + $0x54] sm:$0xf]
    %v252 = vld [vmem:[%s1 + $0x58] sm:$0xf]
    %v253 = vld [vmem:[%s1 + $0x5c] sm:$0xf]
    %v254 = vld [vmem:[%s1 + $0x60] sm:$0xf]
    %v255 = vld [vmem:[%s1 + $0x64] sm:$0xf]
    %v256 = vld [vmem:[%s1 + $0x68] sm:$0xf]
    %v257 = vld [vmem:[%s1 + $0x6c] sm:$0xf]
    %v258 = vld [vmem:[%s1 + $0x70] sm:$0xf]
    %v259 = vld [vmem:[%s1 + $0x74] sm:$0xf]
    %v260 = vld [vmem:[%s1 + $0x78] sm:$0xf]
    %v261 = vld [vmem:[%s1 + $0x7c] sm:$0xf]
    %v262 = vld [vmem:[%s1 + $0x80] sm:$0xf]
    %v263 = vld [vmem:[%s1 + $0x84] sm:$0xf]
    %v264 = vld [vmem:[%s1 + $0x88] sm:$0xf]
    %v265 = vld [vmem:[%s1 + $0x8c] sm:$0xf]
    %v266 = vld [vmem:[%s1 + $0x90] sm:$0xf]
    %v267 = vld [vmem:[%s1 + $0x94] sm:$0xf]
    %v268 = vld [vmem:[%s1 + $0x98] sm:$0xf]
    %v269 = vld [vmem:[%s1 + $0x9c] sm:$0xf]
    %v270 = vld [vmem:[%s1 + $0xa0] sm:$0xf]
    %v271 = vld [vmem:[%s1 + $0xa4] sm:$0xf]
    %v272 = vld [vmem:[%s1 + $0xa8] sm:$0xf]
    %v273 = vld [vmem:[%s1 + $0xac] sm:$0xf]
    %v274 = vld [vmem:[%s1 + $0xb0] sm:$0xf]
    %v275 = vld [vmem:[%s1 + $0xb4] sm:$0xf]
    %v276 = vld [vmem:[%s1 + $0xb8] sm:$0xf]
    %v277 = vld [vmem:[%s1 + $0xbc] sm:$0xf]
    %v278 = vld [vmem:[%s1 + $0xc0] sm:$0xf]
    %v279 = vld [vmem:[%s1 + $0xc4] sm:$0xf]
    %v280 = vld [vmem:[%s1 + $0xc8] sm:$0xf]
    %v281 = vld [vmem:[%s1 + $0xcc] sm:$0xf]
    %v282 = vld [vmem:[%s1 + $0xd0] sm:$0xf]
    %v283 = vld [vmem:[%s1 + $0xd4] sm:$0xf]
    %v284 = vld [vmem:[%s1 + $0xd8] sm:$0xf]
    %v285 = vld [vmem:[%s1 + $0xdc] sm:$0xf]
    %v286 = vld [vmem:[%s1 + $0xe0] sm:$0xf]
    %v287 = vld [vmem:[%s1 + $0xe4] sm:$0xf]
    %v288 = vld [vmem:[%s1 + $0xe8] sm:$0xf]
    %v289 = vld [vmem:[%s1 + $0xec] sm:$0xf]
    %v290 = vld [vmem:[%s1 + $0xf0] sm:$0xf]
    %v291 = vld [vmem:[%s1 + $0xf4] sm:$0xf]
    %v292 = vld [vmem:[%s1 + $0xf8] sm:$0xf]
    %v293 = vld [vmem:[%s1 + $0xfc] sm:$0xf]
    %v294 = vld [vmem:[%s1 + $0x100] sm:$0xf]
    %v295 = vld [vmem:[%s1 + $0x104] sm:$0xf]
    %v296 = vld [vmem:[%s1 + $0x108] sm:$0xf]
    %v297 = vld [vmem:[%s1 + $0x10c] sm:$0xf]
    %v298 = vld [vmem:[%s1 + $0x110] sm:$0xf]
    %v299 = vld [vmem:[%s1 + $0x114] sm:$0xf]
    %v300 = vld [vmem:[%s1 + $0x118] sm:$0xf]
    %v301 = vld [vmem:[%s1 + $0x11c] sm:$0xf]
    %v302 = vld [vmem:[%s1 + $0x120] sm:$0xf]
    %v303 = vld [vmem:[%s1 + $0x124] sm:$0xf]
    %v304 = vld [vmem:[%s1 + $0x128] sm:$0xf]
    %v305 = vld [vmem:[%s1 + $0x12c] sm:$0xf]
    %v306 = vld [vmem:[%s1 + $0x130] sm:$0xf]
    %v307 = vld [vmem:[%s1 + $0x134] sm:$0xf]
    %v308 = vld [vmem:[%s1 + $0x138] sm:$0xf]
    %v309 = vld [vmem:[%s1 + $0x13c] sm:$0xf]
    %v310 = vld [vmem:[%s1 + $0x140] sm:$0xf]
    %v311 = vld [vmem:[%s1 + $0x144] sm:$0xf]
    %v312 = vld [vmem:[%s1 + $0x148] sm:$0xf]
    %v313 = vld [vmem:[%s1 + $0x14c] sm:$0xf]
    %v314 = vld [vmem:[%s1 + $0x150] sm:$0xf]
    %v315 = vld [vmem:[%s1 + $0x154] sm:$0xf]
    %v316 = vld [vmem:[%s1 + $0x158] sm:$0xf]
    %v317 = vld [vmem:[%s1 + $0x15c] sm:$0xf]
    %v318 = vld [vmem:[%s1 + $0x160] sm:$0xf]
    %v319 = vld [vmem:[%s1 + $0x164] sm:$0xf]
    %v320 = vld [vmem:[%s1 + $0x168] sm:$0xf]
    %v321 = vld [vmem:[%s1 + $0x16c] sm:$0xf]
    %v322 = vld [vmem:[%s1 + $0x170] sm:$0xf]
    %v323 = vld [vmem:[%s1 + $0x174] sm:$0xf]
    %v324 = vld [vmem:[%s1 + $0x178] sm:$0xf]
    %v325 = vld [vmem:[%s1 + $0x17c] sm:$0xf]
    %v326 = vld [vmem:[%s1 + $0x180] sm:$0xf]
    %v327 = vld [vmem:[%s1 + $0x184] sm:$0xf]
    %v328 = vld [vmem:[%s1 + $0x188] sm:$0xf]
    %v329 = vld [vmem:[%s1 + $0x18c] sm:$0xf]
    %v330 = vld [vmem:[%s1 + $0x190] sm:$0xf]
    %v331 = vld [vmem:[%s1 + $0x194] sm:$0xf]
    %v332 = vld [vmem:[%s1 + $0x198] sm:$0xf]
    %v333 = vld [vmem:[%s1 + $0x19c] sm:$0xf]
    %v334 = vld [vmem:[%s1 + $0x1a0] sm:$0xf]
    %v335 = vld [vmem:[%s1 + $0x1a4] sm:$0xf]
    %v336 = vld [vmem:[%s1 + $0x1a8] sm:$0xf]
    %v337 = vld [vmem:[%s1 + $0x1ac] sm:$0xf]
    %v338 = vld [vmem:[%s1 + $0x1b0] sm:$0xf]
    %v339 = vld [vmem:[%s1 + $0x1b4] sm:$0xf]
    %v340 = vld [vmem:[%s1 + $0x1b8] sm:$0xf]
    %v341 = vld [vmem:[%s1 + $0x1bc] sm:$0xf]
    %v342 = vld [vmem:[%s1 + $0x1c0] sm:$0xf]
    %v343 = vld [vmem:[%s1 + $0x1c4] sm:$0xf]
    %v344 = vld [vmem:[%s1 + $0x1c8] sm:$0xf]
    %v345 = vld [vmem:[%s1 + $0x1cc] sm:$0xf]
    %v346 = vld [vmem:[%s1 + $0x1d0] sm:$0xf]
    %v347 = vld [vmem:[%s1 + $0x1d4] sm:$0xf]
    %v348 = vld [vmem:[%s1 + $0x1d8] sm:$0xf]
    %v349 = vld [vmem:[%s1 + $0x1dc] sm:$0xf]
    %v350 = vld [vmem:[%s1 + $0x1e0] sm:$0xf]
    %v351 = vld [vmem:[%s1 + $0x1e4] sm:$0xf]
    %v352 = vld [vmem:[%s1 + $0x1e8] sm:$0xf]
    %v353 = vld [vmem:[%s1 + $0x1ec] sm:$0xf]
    %v354 = vld [vmem:[%s1 + $0x1f0] sm:$0xf]
    %v355 = vld [vmem:[%s1 + $0x1f4] sm:$0xf]
    %v356 = vld [vmem:[%s1 + $0x1f8] sm:$0xf]
    %v357 = vld [vmem:[%s1 + $0x1fc] sm:$0xf]
    %v358 = vld [vmem:[%s1 + $0x200] sm:$0xf]
    %v359 = vld [vmem:[%s1 + $0x204] sm:$0xf]
    %v360 = vld [vmem:[%s1 + $0x208] sm:$0xf]
    %v361 = vld [vmem:[%s1 + $0x20c] sm:$0xf]
    %v362 = vld [vmem:[%s1 + $0x210] sm:$0xf]
    %v363 = vld [vmem:[%s1 + $0x214] sm:$0xf]
    %v364 = vld [vmem:[%s1 + $0x218] sm:$0xf]
    %v365 = vld [vmem:[%s1 + $0x21c] sm:$0xf]
    %v366 = vld [vmem:[%s1 + $0x220] sm:$0xf]
    %v367 = vld [vmem:[%s1 + $0x224] sm:$0xf]
    %v368 = vld [vmem:[%s1 + $0x228] sm:$0xf]
    %v369 = vld [vmem:[%s1 + $0x22c] sm:$0xf]
    %v370 = vld [vmem:[%s1 + $0x230] sm:$0xf]
    %v371 = vld [vmem:[%s1 + $0x234] sm:$0xf]
    %v372 = vld [vmem:[%s1 + $0x238] sm:$0xf]
    %v373 = vld [vmem:[%s1 + $0x23c] sm:$0xf]
    %v374 = vld [vmem:[%s1 + $0x240] sm:$0xf]
    %v375 = vld [vmem:[%s1 + $0x244] sm:$0xf]
    %v376 = vld [vmem:[%s1 + $0x248] sm:$0xf]
    %v377 = vld [vmem:[%s1 + $0x24c] sm:$0xf]
    %v378 = vld [vmem:[%s1 + $0x250] sm:$0xf]
    %v379 = vld [vmem:[%s1 + $0x254] sm:$0xf]
    %v380 = vld [vmem:[%s1 + $0x258] sm:$0xf]
    %v381 = vld [vmem:[%s1 + $0x25c] sm:$0xf]
    %v382 = vld [vmem:[%s1 + $0x260] sm:$0xf]
    %v383 = vld [vmem:[%s1 + $0x264] sm:$0xf]
    %v384 = vld [vmem:[%s1 + $0x268] sm:$0xf]
    %v385 = vld [vmem:[%s1 + $0x26c] sm:$0xf]
    %v386 = vld [vmem:[%s1 + $0x270] sm:$0xf]
    %v387 = vld [vmem:[%s1 + $0x274] sm:$0xf]
    %v388 = vld [vmem:[%s1 + $0x278] sm:$0xf]
    %v389 = vld [vmem:[%s1 + $0x27c] sm:$0xf]
    %v390 = vld [vmem:[%s1 + $0x280] sm:$0xf]
    %v391 = vld [vmem:[%s1 + $0x284] sm:$0xf]
    %v392 = vld [vmem:[%s1 + $0x288] sm:$0xf]
    %v393 = vld [vmem:[%s1 + $0x28c] sm:$0xf]
    %v394 = vld [vmem:[%s1 + $0x290] sm:$0xf]
    %v395 = vld [vmem:[%s1 + $0x294] sm:$0xf]
    %v396 = vld [vmem:[%s1 + $0x298] sm:$0xf]
    %v397 = vld [vmem:[%s1 + $0x29c] sm:$0xf]
    %v398 = vld [vmem:[%s1 + $0x2a0] sm:$0xf]
    %v399 = vld [vmem:[%s1 + $0x2a4] sm:$0xf]
    %v400 = vld [vmem:[%s1 + $0x2a8] sm:$0xf]
    %v401 = vld [vmem:[%s1 + $0x2ac] sm:$0xf]
    %v402 = vld [vmem:[%s1 + $0x2b0] sm:$0xf]
    %v403 = vld [vmem:[%s1 + $0x2b4] sm:$0xf]
    %v404 = vld [vmem:[%s1 + $0x2b8] sm:$0xf]
    %v405 = vld [vmem:[%s1 + $0x2bc] sm:$0xf]
    %v406 = vld [vmem:[%s1 + $0x2c0] sm:$0xf]
    %v407 = vld [vmem:[%s1 + $0x2c4] sm:$0xf]
    %v408 = vld [vmem:[%s1 + $0x2c8] sm:$0xf]
    %v409 = vld [vmem:[%s1 + $0x2cc] sm:$0xf]
    %v410 = vld [vmem:[%s1 + $0x2d0] sm:$0xf]
    %v411 = vld [vmem:[%s1 + $0x2d4] sm:$0xf]
    %v412 = vld [vmem:[%s1 + $0x2d8] sm:$0xf]
    %v413 = vld [vmem:[%s1 + $0x2dc] sm:$0xf]
    %v414 = vld [vmem:[%s1 + $0x2e0] sm:$0xf]
    %v415 = vld [vmem:[%s1 + $0x2e4] sm:$0xf]
    %v416 = vld [vmem:[%s1 + $0x2e8] sm:$0xf]
    %v417 = vld [vmem:[%s1 + $0x2ec] sm:$0xf]
    %v418 = vld [vmem:[%s1 + $0x2f0] sm:$0xf]
    %v419 = vld [vmem:[%s1 + $0x2f4] sm:$0xf]
    %v420 = vld [vmem:[%s1 + $0x2f8] sm:$0xf]
    %v421 = vld [vmem:[%s1 + $0x2fc] sm:$0xf]
    %v422 = vld [vmem:[%s1 + $0x300] sm:$0xf]
    %v423 = vld [vmem:[%s1 + $0x304] sm:$0xf]
    %v424 = vld [vmem:[%s1 + $0x308] sm:$0xf]
    %v425 = vld [vmem:[%s1 + $0x30c] sm:$0xf]
    %v426 = vld [vmem:[%s1 + $0x310] sm:$0xf]
    %v427 = vld [vmem:[%s1 + $0x314] sm:$0xf]
    %v428 = vld [vmem:[%s1 + $0x318] sm:$0xf]
    %v429 = vld [vmem:[%s1 + $0x31c] sm:$0xf]
    %v430 = vld [vmem:[%s1 + $0x320] sm:$0xf]
    %v431 = vld [vmem:[%s1 + $0x324] sm:$0xf]
    %v432 = vld [vmem:[%s1 + $0x328] sm:$0xf]
    %v433 = vld [vmem:[%s1 + $0x32c] sm:$0xf]
    %v434 = vld [vmem:[%s1 + $0x330] sm:$0xf]
    %v435 = vld [vmem:[%s1 + $0x334] sm:$0xf]
    %v436 = vld [vmem:[%s1 + $0x338] sm:$0xf]
    %v437 = vld [vmem:[%s1 + $0x33c] sm:$0xf]
    %v438 = vld [vmem:[%s1 + $0x340] sm:$0xf]
    %v439 = vld [vmem:[%s1 + $0x344] sm:$0xf]
    %v440 = vld [vmem:[%s1 + $0x348] sm:$0xf]
    %v441 = vld [vmem:[%s1 + $0x34c] sm:$0xf]
    %v442 = vld [vmem:[%s1 + $0x350] sm:$0xf]
    %v443 = vld [vmem:[%s1 + $0x354] sm:$0xf]
    %v444 = vld [vmem:[%s1 + $0x358] sm:$0xf]
    %v445 = vld [vmem:[%s1 + $0x35c] sm:$0xf]
    %v446 = vld [vmem:[%s1 + $0x360] sm:$0xf]
    %v447 = vld [vmem:[%s1 + $0x364] sm:$0xf]
    %v448 = vld [vmem:[%s1 + $0x368] sm:$0xf]
    %v449 = vld [vmem:[%s1 + $0x36c] sm:$0xf]
    %v450 = vld [vmem:[%s1 + $0x370] sm:$0xf]
    %v451 = vld [vmem:[%s1 + $0x374] sm:$0xf]
    %v452 = vld [vmem:[%s1 + $0x378] sm:$0xf]
    %v453 = vld [vmem:[%s1 + $0x37c] sm:$0xf]
    %v454 = vld [vmem:[%s1 + $0x380] sm:$0xf]
    %v455 = vld [vmem:[%s1 + $0x384] sm:$0xf]
    %v456 = vld [vmem:[%s1 + $0x388] sm:$0xf]
    %v457 = vld [vmem:[%s1 + $0x38c] sm:$0xf]
    %v458 = vld [vmem:[%s1 + $0x390] sm:$0xf]
    %v459 = vld [vmem:[%s1 + $0x394] sm:$0xf]
    %v460 = vld [vmem:[%s1 + $0x398] sm:$0xf]
    %v461 = vld [vmem:[%s1 + $0x39c] sm:$0xf]
    %v462 = vld [vmem:[%s1 + $0x3a0] sm:$0xf]
    %v463 = vld [vmem:[%s1 + $0x3a4] sm:$0xf]
    %v464 = vld [vmem:[%s1 + $0x3a8] sm:$0xf]
    %v465 = vld [vmem:[%s1 + $0x3ac] sm:$0xf]
    %v466 = vld [vmem:[%s1 + $0x3b0] sm:$0xf]
    %v467 = vld [vmem:[%s1 + $0x3b4] sm:$0xf]
    %v468 = vld [vmem:[%s1 + $0x3b8] sm:$0xf]
    %v469 = vld [vmem:[%s1 + $0x3bc] sm:$0xf]
    %v470 = vld [vmem:[%s1 + $0x3c0] sm:$0xf]
    %v471 = vld [vmem:[%s1 + $0x3c4] sm:$0xf]
    %v472 = vld [vmem:[%s1 + $0x3c8] sm:$0xf]
    %v473 = vld [vmem:[%s1 + $0x3cc] sm:$0xf]
    %v474 = vld [vmem:[%s1 + $0x3d0] sm:$0xf]
    %v475 = vld [vmem:[%s1 + $0x3d4] sm:$0xf]
    %v476 = vld [vmem:[%s1 + $0x3d8] sm:$0xf]
    %v477 = vld [vmem:[%s1 + $0x3dc] sm:$0xf]
    %v478 = vld [vmem:[%s1 + $0x3e0] sm:$0xf]
    %v479 = vld [vmem:[%s1 + $0x3e4] sm:$0xf]
    %v480 = vld [vmem:[%s1 + $0x3e8] sm:$0xf]
    %v481 = vld [vmem:[%s1 + $0x3ec] sm:$0xf]
    %v482 = vld [vmem:[%s1 + $0x3f0] sm:$0xf]
    %v483 = vld [vmem:[%s1 + $0x3f4] sm:$0xf]
    %v484 = vld [vmem:[%s1 + $0x3f8] sm:$0xf]
    %v485 = vld [vmem:[%s1 + $0x3fc] sm:$0xf]
    %v486 = vld [vmem:[%s2] sm:$0x1]
    %v488 = vlaneseq
    %v489 = vshrl.u32 %v488, 7
    %v490 = vsub.s32 0, %v489
    %v491 = vrot.slane %v486, %v490
    %v749 = vunpack.c.l.b16 %v230
    %v750 = vunpack.c.l.b16 %v231
    %v751 = vunpack.c.l.b16 %v232
    %v752 = vunpack.c.l.b16 %v233
    %v753 = vunpack.c.l.b16 %v234
    %v754 = vunpack.c.l.b16 %v235
    %v755 = vunpack.c.l.b16 %v236
    %v756 = vunpack.c.l.b16 %v237
    %v757 = vunpack.c.l.b16 %v238
    %v758 = vunpack.c.l.b16 %v239
    %v759 = vunpack.c.l.b16 %v240
    %v760 = vunpack.c.l.b16 %v241
    %v761 = vunpack.c.l.b16 %v242
    %v762 = vunpack.c.l.b16 %v243
    %v763 = vunpack.c.l.b16 %v244
    %v764 = vunpack.c.l.b16 %v245
    %v765 = vunpack.c.l.b16 %v246
    %v766 = vunpack.c.l.b16 %v247
    %v767 = vunpack.c.l.b16 %v248
    %v768 = vunpack.c.l.b16 %v249
    %v769 = vunpack.c.l.b16 %v250
    %v770 = vunpack.c.l.b16 %v251
    %v771 = vunpack.c.l.b16 %v252
    %v772 = vunpack.c.l.b16 %v253
    %v773 = vunpack.c.l.b16 %v254
    %v774 = vunpack.c.l.b16 %v255
    %v775 = vunpack.c.l.b16 %v256
    %v776 = vunpack.c.l.b16 %v257
    %v777 = vunpack.c.l.b16 %v258
    %v778 = vunpack.c.l.b16 %v259
    %v779 = vunpack.c.l.b16 %v260
    %v780 = vunpack.c.l.b16 %v261
    %v781 = vunpack.c.l.b16 %v262
    %v782 = vunpack.c.l.b16 %v263
    %v783 = vunpack.c.l.b16 %v264
    %v784 = vunpack.c.l.b16 %v265
    %v785 = vunpack.c.l.b16 %v266
    %v786 = vunpack.c.l.b16 %v267
    %v787 = vunpack.c.l.b16 %v268
    %v788 = vunpack.c.l.b16 %v269
    %v789 = vunpack.c.l.b16 %v270
    %v790 = vunpack.c.l.b16 %v271
    %v791 = vunpack.c.l.b16 %v272
    %v792 = vunpack.c.l.b16 %v273
    %v793 = vunpack.c.l.b16 %v274
    %v794 = vunpack.c.l.b16 %v275
    %v795 = vunpack.c.l.b16 %v276
    %v796 = vunpack.c.l.b16 %v277
    %v797 = vunpack.c.l.b16 %v278
    %v798 = vunpack.c.l.b16 %v279
    %v799 = vunpack.c.l.b16 %v280
    %v800 = vunpack.c.l.b16 %v281
    %v801 = vunpack.c.l.b16 %v282
    %v802 = vunpack.c.l.b16 %v283
    %v803 = vunpack.c.l.b16 %v284
    %v804 = vunpack.c.l.b16 %v285
    %v805 = vunpack.c.l.b16 %v286
    %v806 = vunpack.c.l.b16 %v287
    %v807 = vunpack.c.l.b16 %v288
    %v808 = vunpack.c.l.b16 %v289
    %v809 = vunpack.c.l.b16 %v290
    %v810 = vunpack.c.l.b16 %v291
    %v811 = vunpack.c.l.b16 %v292
    %v812 = vunpack.c.l.b16 %v293
    %v813 = vunpack.c.l.b16 %v294
    %v814 = vunpack.c.l.b16 %v295
    %v815 = vunpack.c.l.b16 %v296
    %v816 = vunpack.c.l.b16 %v297
    %v817 = vunpack.c.l.b16 %v298
    %v818 = vunpack.c.l.b16 %v299
    %v819 = vunpack.c.l.b16 %v300
    %v820 = vunpack.c.l.b16 %v301
    %v821 = vunpack.c.l.b16 %v302
    %v822 = vunpack.c.l.b16 %v303
    %v823 = vunpack.c.l.b16 %v304
    %v824 = vunpack.c.l.b16 %v305
    %v825 = vunpack.c.l.b16 %v306
    %v826 = vunpack.c.l.b16 %v307
    %v827 = vunpack.c.l.b16 %v308
    %v828 = vunpack.c.l.b16 %v309
    %v829 = vunpack.c.l.b16 %v310
    %v830 = vunpack.c.l.b16 %v311
    %v831 = vunpack.c.l.b16 %v312
    %v832 = vunpack.c.l.b16 %v313
    %v833 = vunpack.c.l.b16 %v314
    %v834 = vunpack.c.l.b16 %v315
    %v835 = vunpack.c.l.b16 %v316
    %v836 = vunpack.c.l.b16 %v317
    %v837 = vunpack.c.l.b16 %v318
    %v838 = vunpack.c.l.b16 %v319
    %v839 = vunpack.c.l.b16 %v320
    %v840 = vunpack.c.l.b16 %v321
    %v841 = vunpack.c.l.b16 %v322
    %v842 = vunpack.c.l.b16 %v323
    %v843 = vunpack.c.l.b16 %v324
    %v844 = vunpack.c.l.b16 %v325
    %v845 = vunpack.c.l.b16 %v326
    %v846 = vunpack.c.l.b16 %v327
    %v847 = vunpack.c.l.b16 %v328
    %v848 = vunpack.c.l.b16 %v329
    %v849 = vunpack.c.l.b16 %v330
    %v850 = vunpack.c.l.b16 %v331
    %v851 = vunpack.c.l.b16 %v332
    %v852 = vunpack.c.l.b16 %v333
    %v853 = vunpack.c.l.b16 %v334
    %v854 = vunpack.c.l.b16 %v335
    %v855 = vunpack.c.l.b16 %v336
    %v856 = vunpack.c.l.b16 %v337
    %v857 = vunpack.c.l.b16 %v338
    %v858 = vunpack.c.l.b16 %v339
    %v859 = vunpack.c.l.b16 %v340
    %v860 = vunpack.c.l.b16 %v341
    %v861 = vunpack.c.l.b16 %v342
    %v862 = vunpack.c.l.b16 %v343
    %v863 = vunpack.c.l.b16 %v344
    %v864 = vunpack.c.l.b16 %v345
    %v865 = vunpack.c.l.b16 %v346
    %v866 = vunpack.c.l.b16 %v347
    %v867 = vunpack.c.l.b16 %v348
    %v868 = vunpack.c.l.b16 %v349
    %v869 = vunpack.c.l.b16 %v350
    %v870 = vunpack.c.l.b16 %v351
    %v871 = vunpack.c.l.b16 %v352
    %v872 = vunpack.c.l.b16 %v353
    %v873 = vunpack.c.l.b16 %v354
    %v874 = vunpack.c.l.b16 %v355
    %v875 = vunpack.c.l.b16 %v356
    %v876 = vunpack.c.l.b16 %v357
    %v877 = vunpack.c.l.b16 %v358
    %v878 = vunpack.c.l.b16 %v359
    %v879 = vunpack.c.l.b16 %v360
    %v880 = vunpack.c.l.b16 %v361
    %v881 = vunpack.c.l.b16 %v362
    %v882 = vunpack.c.l.b16 %v363
    %v883 = vunpack.c.l.b16 %v364
    %v884 = vunpack.c.l.b16 %v365
    %v885 = vunpack.c.l.b16 %v366
    %v886 = vunpack.c.l.b16 %v367
    %v887 = vunpack.c.l.b16 %v368
    %v888 = vunpack.c.l.b16 %v369
    %v889 = vunpack.c.l.b16 %v370
    %v890 = vunpack.c.l.b16 %v371
    %v891 = vunpack.c.l.b16 %v372
    %v892 = vunpack.c.l.b16 %v373
    %v893 = vunpack.c.l.b16 %v374
    %v894 = vunpack.c.l.b16 %v375
    %v895 = vunpack.c.l.b16 %v376
    %v896 = vunpack.c.l.b16 %v377
    %v897 = vunpack.c.l.b16 %v378
    %v898 = vunpack.c.l.b16 %v379
    %v899 = vunpack.c.l.b16 %v380
    %v900 = vunpack.c.l.b16 %v381
    %v901 = vunpack.c.l.b16 %v382
    %v902 = vunpack.c.l.b16 %v383
    %v903 = vunpack.c.l.b16 %v384
    %v904 = vunpack.c.l.b16 %v385
    %v905 = vunpack.c.l.b16 %v386
    %v906 = vunpack.c.l.b16 %v387
    %v907 = vunpack.c.l.b16 %v388
    %v908 = vunpack.c.l.b16 %v389
    %v909 = vunpack.c.l.b16 %v390
    %v910 = vunpack.c.l.b16 %v391
    %v911 = vunpack.c.l.b16 %v392
    %v912 = vunpack.c.l.b16 %v393
    %v913 = vunpack.c.l.b16 %v394
    %v914 = vunpack.c.l.b16 %v395
    %v915 = vunpack.c.l.b16 %v396
    %v916 = vunpack.c.l.b16 %v397
    %v917 = vunpack.c.l.b16 %v398
    %v918 = vunpack.c.l.b16 %v399
    %v919 = vunpack.c.l.b16 %v400
    %v920 = vunpack.c.l.b16 %v401
    %v921 = vunpack.c.l.b16 %v402
    %v922 = vunpack.c.l.b16 %v403
    %v923 = vunpack.c.l.b16 %v404
    %v924 = vunpack.c.l.b16 %v405
    %v925 = vunpack.c.l.b16 %v406
    %v926 = vunpack.c.l.b16 %v407
    %v927 = vunpack.c.l.b16 %v408
    %v928 = vunpack.c.l.b16 %v409
    %v929 = vunpack.c.l.b16 %v410
    %v930 = vunpack.c.l.b16 %v411
    %v931 = vunpack.c.l.b16 %v412
    %v932 = vunpack.c.l.b16 %v413
    %v933 = vunpack.c.l.b16 %v414
    %v934 = vunpack.c.l.b16 %v415
    %v935 = vunpack.c.l.b16 %v416
    %v936 = vunpack.c.l.b16 %v417
    %v937 = vunpack.c.l.b16 %v418
    %v938 = vunpack.c.l.b16 %v419
    %v939 = vunpack.c.l.b16 %v420
    %v940 = vunpack.c.l.b16 %v421
    %v941 = vunpack.c.l.b16 %v422
    %v942 = vunpack.c.l.b16 %v423
    %v943 = vunpack.c.l.b16 %v424
    %v944 = vunpack.c.l.b16 %v425
    %v945 = vunpack.c.l.b16 %v426
    %v946 = vunpack.c.l.b16 %v427
    %v947 = vunpack.c.l.b16 %v428
    %v948 = vunpack.c.l.b16 %v429
    %v949 = vunpack.c.l.b16 %v430
    %v950 = vunpack.c.l.b16 %v431
    %v951 = vunpack.c.l.b16 %v432
    %v952 = vunpack.c.l.b16 %v433
    %v953 = vunpack.c.l.b16 %v434
    %v954 = vunpack.c.l.b16 %v435
    %v955 = vunpack.c.l.b16 %v436
    %v956 = vunpack.c.l.b16 %v437
    %v957 = vunpack.c.l.b16 %v438
    %v958 = vunpack.c.l.b16 %v439
    %v959 = vunpack.c.l.b16 %v440
    %v960 = vunpack.c.l.b16 %v441
    %v961 = vunpack.c.l.b16 %v442
    %v962 = vunpack.c.l.b16 %v443
    %v963 = vunpack.c.l.b16 %v444
    %v964 = vunpack.c.l.b16 %v445
    %v965 = vunpack.c.l.b16 %v446
    %v966 = vunpack.c.l.b16 %v447
    %v967 = vunpack.c.l.b16 %v448
    %v968 = vunpack.c.l.b16 %v449
    %v969 = vunpack.c.l.b16 %v450
    %v970 = vunpack.c.l.b16 %v451
    %v971 = vunpack.c.l.b16 %v452
    %v972 = vunpack.c.l.b16 %v453
    %v973 = vunpack.c.l.b16 %v454
    %v974 = vunpack.c.l.b16 %v455
    %v975 = vunpack.c.l.b16 %v456
    %v976 = vunpack.c.l.b16 %v457
    %v977 = vunpack.c.l.b16 %v458
    %v978 = vunpack.c.l.b16 %v459
    %v979 = vunpack.c.l.b16 %v460
    %v980 = vunpack.c.l.b16 %v461
    %v981 = vunpack.c.l.b16 %v462
    %v982 = vunpack.c.l.b16 %v463
    %v983 = vunpack.c.l.b16 %v464
    %v984 = vunpack.c.l.b16 %v465
    %v985 = vunpack.c.l.b16 %v466
    %v986 = vunpack.c.l.b16 %v467
    %v987 = vunpack.c.l.b16 %v468
    %v988 = vunpack.c.l.b16 %v469
    %v989 = vunpack.c.l.b16 %v470
    %v990 = vunpack.c.l.b16 %v471
    %v991 = vunpack.c.l.b16 %v472
    %v992 = vunpack.c.l.b16 %v473
    %v993 = vunpack.c.l.b16 %v474
    %v994 = vunpack.c.l.b16 %v475
    %v995 = vunpack.c.l.b16 %v476
    %v996 = vunpack.c.l.b16 %v477
    %v997 = vunpack.c.l.b16 %v478
    %v998 = vunpack.c.l.b16 %v479
    %v999 = vunpack.c.l.b16 %v480
    %v1000 = vunpack.c.l.b16 %v481
    %v1001 = vunpack.c.l.b16 %v482
    %v1002 = vunpack.c.l.b16 %v483
    %v1003 = vunpack.c.l.b16 %v484
    %v1004 = vunpack.c.l.b16 %v485
    %v1005 = vpack.c.b16 %v750, %v749
    %v1006 = vpack.c.b16 %v752, %v751
    %v1007 = vpack.c.b16 %v754, %v753
    %v1008 = vpack.c.b16 %v756, %v755
    %v1009 = vpack.c.b16 %v758, %v757
    %v1010 = vpack.c.b16 %v760, %v759
    %v1011 = vpack.c.b16 %v762, %v761
    %v1012 = vpack.c.b16 %v764, %v763
    %v1013 = vpack.c.b16 %v766, %v765
    %v1014 = vpack.c.b16 %v768, %v767
    %v1015 = vpack.c.b16 %v770, %v769
    %v1016 = vpack.c.b16 %v772, %v771
    %v1017 = vpack.c.b16 %v774, %v773
    %v1018 = vpack.c.b16 %v776, %v775
    %v1019 = vpack.c.b16 %v778, %v777
    %v1020 = vpack.c.b16 %v780, %v779
    %v1021 = vpack.c.b16 %v782, %v781
    %v1022 = vpack.c.b16 %v784, %v783
    %v1023 = vpack.c.b16 %v786, %v785
    %v1024 = vpack.c.b16 %v788, %v787
    %v1025 = vpack.c.b16 %v790, %v789
    %v1026 = vpack.c.b16 %v792, %v791
    %v1027 = vpack.c.b16 %v794, %v793
    %v1028 = vpack.c.b16 %v796, %v795
    %v1029 = vpack.c.b16 %v798, %v797
    %v1030 = vpack.c.b16 %v800, %v799
    %v1031 = vpack.c.b16 %v802, %v801
    %v1032 = vpack.c.b16 %v804, %v803
    %v1033 = vpack.c.b16 %v806, %v805
    %v1034 = vpack.c.b16 %v808, %v807
    %v1035 = vpack.c.b16 %v810, %v809
    %v1036 = vpack.c.b16 %v812, %v811
    %v1037 = vpack.c.b16 %v814, %v813
    %v1038 = vpack.c.b16 %v816, %v815
    %v1039 = vpack.c.b16 %v818, %v817
    %v1040 = vpack.c.b16 %v820, %v819
    %v1041 = vpack.c.b16 %v822, %v821
    %v1042 = vpack.c.b16 %v824, %v823
    %v1043 = vpack.c.b16 %v826, %v825
    %v1044 = vpack.c.b16 %v828, %v827
    %v1045 = vpack.c.b16 %v830, %v829
    %v1046 = vpack.c.b16 %v832, %v831
    %v1047 = vpack.c.b16 %v834, %v833
    %v1048 = vpack.c.b16 %v836, %v835
    %v1049 = vpack.c.b16 %v838, %v837
    %v1050 = vpack.c.b16 %v840, %v839
    %v1051 = vpack.c.b16 %v842, %v841
    %v1052 = vpack.c.b16 %v844, %v843
    %v1053 = vpack.c.b16 %v846, %v845
    %v1054 = vpack.c.b16 %v848, %v847
    %v1055 = vpack.c.b16 %v850, %v849
    %v1056 = vpack.c.b16 %v852, %v851
    %v1057 = vpack.c.b16 %v854, %v853
    %v1058 = vpack.c.b16 %v856, %v855
    %v1059 = vpack.c.b16 %v858, %v857
    %v1060 = vpack.c.b16 %v860, %v859
    %v1061 = vpack.c.b16 %v862, %v861
    %v1062 = vpack.c.b16 %v864, %v863
    %v1063 = vpack.c.b16 %v866, %v865
    %v1064 = vpack.c.b16 %v868, %v867
    %v1065 = vpack.c.b16 %v870, %v869
    %v1066 = vpack.c.b16 %v872, %v871
    %v1067 = vpack.c.b16 %v874, %v873
    %v1068 = vpack.c.b16 %v876, %v875
    %v1069 = vpack.c.b16 %v878, %v877
    %v1070 = vpack.c.b16 %v880, %v879
    %v1071 = vpack.c.b16 %v882, %v881
    %v1072 = vpack.c.b16 %v884, %v883
    %v1073 = vpack.c.b16 %v886, %v885
    %v1074 = vpack.c.b16 %v888, %v887
    %v1075 = vpack.c.b16 %v890, %v889
    %v1076 = vpack.c.b16 %v892, %v891
    %v1077 = vpack.c.b16 %v894, %v893
    %v1078 = vpack.c.b16 %v896, %v895
    %v1079 = vpack.c.b16 %v898, %v897
    %v1080 = vpack.c.b16 %v900, %v899
    %v1081 = vpack.c.b16 %v902, %v901
    %v1082 = vpack.c.b16 %v904, %v903
    %v1083 = vpack.c.b16 %v906, %v905
    %v1084 = vpack.c.b16 %v908, %v907
    %v1085 = vpack.c.b16 %v910, %v909
    %v1086 = vpack.c.b16 %v912, %v911
    %v1087 = vpack.c.b16 %v914, %v913
    %v1088 = vpack.c.b16 %v916, %v915
    %v1089 = vpack.c.b16 %v918, %v917
    %v1090 = vpack.c.b16 %v920, %v919
    %v1091 = vpack.c.b16 %v922, %v921
    %v1092 = vpack.c.b16 %v924, %v923
    %v1093 = vpack.c.b16 %v926, %v925
    %v1094 = vpack.c.b16 %v928, %v927
    %v1095 = vpack.c.b16 %v930, %v929
    %v1096 = vpack.c.b16 %v932, %v931
    %v1097 = vpack.c.b16 %v934, %v933
    %v1098 = vpack.c.b16 %v936, %v935
    %v1099 = vpack.c.b16 %v938, %v937
    %v1100 = vpack.c.b16 %v940, %v939
    %v1101 = vpack.c.b16 %v942, %v941
    %v1102 = vpack.c.b16 %v944, %v943
    %v1103 = vpack.c.b16 %v946, %v945
    %v1104 = vpack.c.b16 %v948, %v947
    %v1105 = vpack.c.b16 %v950, %v949
    %v1106 = vpack.c.b16 %v952, %v951
    %v1107 = vpack.c.b16 %v954, %v953
    %v1108 = vpack.c.b16 %v956, %v955
    %v1109 = vpack.c.b16 %v958, %v957
    %v1110 = vpack.c.b16 %v960, %v959
    %v1111 = vpack.c.b16 %v962, %v961
    %v1112 = vpack.c.b16 %v964, %v963
    %v1113 = vpack.c.b16 %v966, %v965
    %v1114 = vpack.c.b16 %v968, %v967
    %v1115 = vpack.c.b16 %v970, %v969
    %v1116 = vpack.c.b16 %v972, %v971
    %v1117 = vpack.c.b16 %v974, %v973
    %v1118 = vpack.c.b16 %v976, %v975
    %v1119 = vpack.c.b16 %v978, %v977
    %v1120 = vpack.c.b16 %v980, %v979
    %v1121 = vpack.c.b16 %v982, %v981
    %v1122 = vpack.c.b16 %v984, %v983
    %v1123 = vpack.c.b16 %v986, %v985
    %v1124 = vpack.c.b16 %v988, %v987
    %v1125 = vpack.c.b16 %v990, %v989
    %v1126 = vpack.c.b16 %v992, %v991
    %v1127 = vpack.c.b16 %v994, %v993
    %v1128 = vpack.c.b16 %v996, %v995
    %v1129 = vpack.c.b16 %v998, %v997
    %v1130 = vpack.c.b16 %v1000, %v999
    %v1131 = vpack.c.b16 %v1002, %v1001
    %v1132 = vpack.c.b16 %v1004, %v1003
    %1261 = vmatprep.subr.bf16.mxu0 0
    %1262 = vmatpush1.bf16.msra.mxu0 %v1005
    %1263 = vmatprep.subr.bf16.mxu0 0
    %1264 = vmatpush1.bf16.msra.mxu0 %v1006
    %1265 = vmatprep.subr.bf16.mxu0 0
    %1266 = vmatpush1.bf16.msra.mxu0 %v1007
    %1267 = vmatprep.subr.bf16.mxu0 0
    %1268 = vmatpush1.bf16.msra.mxu0 %v1008
    %1269 = vmatprep.subr.bf16.mxu0 0
    %1270 = vmatpush1.bf16.msra.mxu0 %v1009
    %1271 = vmatprep.subr.bf16.mxu0 0
    %1272 = vmatpush1.bf16.msra.mxu0 %v1010
    %1273 = vmatprep.subr.bf16.mxu0 0
    %1274 = vmatpush1.bf16.msra.mxu0 %v1011
    %1275 = vmatprep.subr.bf16.mxu0 0
    %1276 = vmatpush1.bf16.msra.mxu0 %v1012
    %1277 = vmatprep.subr.bf16.mxu0 0
    %1278 = vmatpush1.bf16.msra.mxu0 %v1013
    %1279 = vmatprep.subr.bf16.mxu0 0
    %1280 = vmatpush1.bf16.msra.mxu0 %v1014
    %1281 = vmatprep.subr.bf16.mxu0 0
    %1282 = vmatpush1.bf16.msra.mxu0 %v1015
    %1283 = vmatprep.subr.bf16.mxu0 0
    %1284 = vmatpush1.bf16.msra.mxu0 %v1016
    %1285 = vmatprep.subr.bf16.mxu0 0
    %1286 = vmatpush1.bf16.msra.mxu0 %v1017
    %1287 = vmatprep.subr.bf16.mxu0 0
    %1288 = vmatpush1.bf16.msra.mxu0 %v1018
    %1289 = vmatprep.subr.bf16.mxu0 0
    %1290 = vmatpush1.bf16.msra.mxu0 %v1019
    %1291 = vmatprep.subr.bf16.mxu0 0
    %1292 = vmatpush1.bf16.msra.mxu0 %v1020
    %1293 = vmatprep.mubr.bf16.mxu0 %v215
    %1294 = vmatmul.mubr.bf16.gmra.mrb[0].mxu0 %v214
    %v1295 = vpop.f32.mrb[0].mxu0
    %v1296 = vadd.f32 %v491, %v1295
    %v1297 = vpop.f32.mrb[0].mxu0
    %v1298 = vpop.f32.mrb[0].mxu0
    %v1299 = vpop.f32.mrb[0].mxu0
    %1300 = vdwg.mxu0
    %1301 = vmatprep.subr.bf16.mxu0 0
    %1302 = vmatpush1.bf16.msra.mxu0 %v1021
    %1303 = vmatprep.subr.bf16.mxu0 0
    %1304 = vmatpush1.bf16.msra.mxu0 %v1022
    %1305 = vmatprep.subr.bf16.mxu0 0
    %1306 = vmatpush1.bf16.msra.mxu0 %v1023
    %1307 = vmatprep.subr.bf16.mxu0 0
    %1308 = vmatpush1.bf16.msra.mxu0 %v1024
    %1309 = vmatprep.subr.bf16.mxu0 0
    %1310 = vmatpush1.bf16.msra.mxu0 %v1025
    %1311 = vmatprep.subr.bf16.mxu0 0
    %1312 = vmatpush1.bf16.msra.mxu0 %v1026
    %1313 = vmatprep.subr.bf16.mxu0 0
    %1314 = vmatpush1.bf16.msra.mxu0 %v1027
    %1315 = vmatprep.subr.bf16.mxu0 0
    %1316 = vmatpush1.bf16.msra.mxu0 %v1028
    %1317 = vmatprep.subr.bf16.mxu0 0
    %1318 = vmatpush1.bf16.msra.mxu0 %v1029
    %1319 = vmatprep.subr.bf16.mxu0 0
    %1320 = vmatpush1.bf16.msra.mxu0 %v1030
    %1321 = vmatprep.subr.bf16.mxu0 0
    %1322 = vmatpush1.bf16.msra.mxu0 %v1031
    %1323 = vmatprep.subr.bf16.mxu0 0
    %1324 = vmatpush1.bf16.msra.mxu0 %v1032
    %1325 = vmatprep.subr.bf16.mxu0 0
    %1326 = vmatpush1.bf16.msra.mxu0 %v1033
    %1327 = vmatprep.subr.bf16.mxu0 0
    %1328 = vmatpush1.bf16.msra.mxu0 %v1034
    %1329 = vmatprep.subr.bf16.mxu0 0
    %1330 = vmatpush1.bf16.msra.mxu0 %v1035
    %1331 = vmatprep.subr.bf16.mxu0 0
    %1332 = vmatpush1.bf16.msra.mxu0 %v1036
    %1333 = vmatprep.mubr.bf16.mxu0 %v217
    %1334 = vmatmul.mubr.bf16.gmra.mrb[0].mxu0 %v216
    %v1335 = vpop.f32.mrb[0].mxu0
    %v1336 = vadd.f32 %v1296, %v1335
    %v1337 = vpop.f32.mrb[0].mxu0
    %v1338 = vpop.f32.mrb[0].mxu0
    %v1339 = vpop.f32.mrb[0].mxu0
    %1340 = vdwg.mxu0
    %1341 = vmatprep.subr.bf16.mxu0 0
    %1342 = vmatpush1.bf16.msra.mxu0 %v1037
    %1343 = vmatprep.subr.bf16.mxu0 0
    %1344 = vmatpush1.bf16.msra.mxu0 %v1038
    %1345 = vmatprep.subr.bf16.mxu0 0
    %1346 = vmatpush1.bf16.msra.mxu0 %v1039
    %1347 = vmatprep.subr.bf16.mxu0 0
    %1348 = vmatpush1.bf16.msra.mxu0 %v1040
    %1349 = vmatprep.subr.bf16.mxu0 0
    %1350 = vmatpush1.bf16.msra.mxu0 %v1041
    %1351 = vmatprep.subr.bf16.mxu0 0
    %1352 = vmatpush1.bf16.msra.mxu0 %v1042
    %1353 = vmatprep.subr.bf16.mxu0 0
    %1354 = vmatpush1.bf16.msra.mxu0 %v1043
    %1355 = vmatprep.subr.bf16.mxu0 0
    %1356 = vmatpush1.bf16.msra.mxu0 %v1044
    %1357 = vmatprep.subr.bf16.mxu0 0
    %1358 = vmatpush1.bf16.msra.mxu0 %v1045
    %1359 = vmatprep.subr.bf16.mxu0 0
    %1360 = vmatpush1.bf16.msra.mxu0 %v1046
    %1361 = vmatprep.subr.bf16.mxu0 0
    %1362 = vmatpush1.bf16.msra.mxu0 %v1047
    %1363 = vmatprep.subr.bf16.mxu0 0
    %1364 = vmatpush1.bf16.msra.mxu0 %v1048
    %1365 = vmatprep.subr.bf16.mxu0 0
    %1366 = vmatpush1.bf16.msra.mxu0 %v1049
    %1367 = vmatprep.subr.bf16.mxu0 0
    %1368 = vmatpush1.bf16.msra.mxu0 %v1050
    %1369 = vmatprep.subr.bf16.mxu0 0
    %1370 = vmatpush1.bf16.msra.mxu0 %v1051
    %1371 = vmatprep.subr.bf16.mxu0 0
    %1372 = vmatpush1.bf16.msra.mxu0 %v1052
    %1373 = vmatprep.mubr.bf16.mxu0 %v219
    %1374 = vmatmul.mubr.bf16.gmra.mrb[0].mxu0 %v218
    %v1375 = vpop.f32.mrb[0].mxu0
    %v1376 = vadd.f32 %v1336, %v1375
    %v1377 = vpop.f32.mrb[0].mxu0
    %v1378 = vpop.f32.mrb[0].mxu0
    %v1379 = vpop.f32.mrb[0].mxu0
    %1380 = vdwg.mxu0
    %1381 = vmatprep.subr.bf16.mxu0 0
    %1382 = vmatpush1.bf16.msra.mxu0 %v1053
    %1383 = vmatprep.subr.bf16.mxu0 0
    %1384 = vmatpush1.bf16.msra.mxu0 %v1054
    %1385 = vmatprep.subr.bf16.mxu0 0
    %1386 = vmatpush1.bf16.msra.mxu0 %v1055
    %1387 = vmatprep.subr.bf16.mxu0 0
    %1388 = vmatpush1.bf16.msra.mxu0 %v1056
    %1389 = vmatprep.subr.bf16.mxu0 0
    %1390 = vmatpush1.bf16.msra.mxu0 %v1057
    %1391 = vmatprep.subr.bf16.mxu0 0
    %1392 = vmatpush1.bf16.msra.mxu0 %v1058
    %1393 = vmatprep.subr.bf16.mxu0 0
    %1394 = vmatpush1.bf16.msra.mxu0 %v1059
    %1395 = vmatprep.subr.bf16.mxu0 0
    %1396 = vmatpush1.bf16.msra.mxu0 %v1060
    %1397 = vmatprep.subr.bf16.mxu0 0
    %1398 = vmatpush1.bf16.msra.mxu0 %v1061
    %1399 = vmatprep.subr.bf16.mxu0 0
    %1400 = vmatpush1.bf16.msra.mxu0 %v1062
    %1401 = vmatprep.subr.bf16.mxu0 0
    %1402 = vmatpush1.bf16.msra.mxu0 %v1063
    %1403 = vmatprep.subr.bf16.mxu0 0
    %1404 = vmatpush1.bf16.msra.mxu0 %v1064
    %1405 = vmatprep.subr.bf16.mxu0 0
    %1406 = vmatpush1.bf16.msra.mxu0 %v1065
    %1407 = vmatprep.subr.bf16.mxu0 0
    %1408 = vmatpush1.bf16.msra.mxu0 %v1066
    %1409 = vmatprep.subr.bf16.mxu0 0
    %1410 = vmatpush1.bf16.msra.mxu0 %v1067
    %1411 = vmatprep.subr.bf16.mxu0 0
    %1412 = vmatpush1.bf16.msra.mxu0 %v1068
    %1413 = vmatprep.mubr.bf16.mxu0 %v221
    %1414 = vmatmul.mubr.bf16.gmra.mrb[0].mxu0 %v220
    %v1415 = vpop.f32.mrb[0].mxu0
    %v1416 = vadd.f32 %v1376, %v1415
    %v1417 = vpop.f32.mrb[0].mxu0
    %v1418 = vpop.f32.mrb[0].mxu0
    %v1419 = vpop.f32.mrb[0].mxu0
    %1420 = vdwg.mxu0
    %1421 = vmatprep.subr.bf16.mxu0 0
    %1422 = vmatpush1.bf16.msra.mxu0 %v1069
    %1423 = vmatprep.subr.bf16.mxu0 0
    %1424 = vmatpush1.bf16.msra.mxu0 %v1070
    %1425 = vmatprep.subr.bf16.mxu0 0
    %1426 = vmatpush1.bf16.msra.mxu0 %v1071
    %1427 = vmatprep.subr.bf16.mxu0 0
    %1428 = vmatpush1.bf16.msra.mxu0 %v1072
    %1429 = vmatprep.subr.bf16.mxu0 0
    %1430 = vmatpush1.bf16.msra.mxu0 %v1073
    %1431 = vmatprep.subr.bf16.mxu0 0
    %1432 = vmatpush1.bf16.msra.mxu0 %v1074
    %1433 = vmatprep.subr.bf16.mxu0 0
    %1434 = vmatpush1.bf16.msra.mxu0 %v1075
    %1435 = vmatprep.subr.bf16.mxu0 0
    %1436 = vmatpush1.bf16.msra.mxu0 %v1076
    %1437 = vmatprep.subr.bf16.mxu0 0
    %1438 = vmatpush1.bf16.msra.mxu0 %v1077
    %1439 = vmatprep.subr.bf16.mxu0 0
    %1440 = vmatpush1.bf16.msra.mxu0 %v1078
    %1441 = vmatprep.subr.bf16.mxu0 0
    %1442 = vmatpush1.bf16.msra.mxu0 %v1079
    %1443 = vmatprep.subr.bf16.mxu0 0
    %1444 = vmatpush1.bf16.msra.mxu0 %v1080
    %1445 = vmatprep.subr.bf16.mxu0 0
    %1446 = vmatpush1.bf16.msra.mxu0 %v1081
    %1447 = vmatprep.subr.bf16.mxu0 0
    %1448 = vmatpush1.bf16.msra.mxu0 %v1082
    %1449 = vmatprep.subr.bf16.mxu0 0
    %1450 = vmatpush1.bf16.msra.mxu0 %v1083
    %1451 = vmatprep.subr.bf16.mxu0 0
    %1452 = vmatpush1.bf16.msra.mxu0 %v1084
    %1453 = vmatprep.mubr.bf16.mxu0 %v223
    %1454 = vmatmul.mubr.bf16.gmra.mrb[0].mxu0 %v222
    %v1455 = vpop.f32.mrb[0].mxu0
    %v1456 = vadd.f32 %v1416, %v1455
    %v1457 = vpop.f32.mrb[0].mxu0
    %v1458 = vpop.f32.mrb[0].mxu0
    %v1459 = vpop.f32.mrb[0].mxu0
    %1460 = vdwg.mxu0
    %1461 = vmatprep.subr.bf16.mxu0 0
    %1462 = vmatpush1.bf16.msra.mxu0 %v1085
    %1463 = vmatprep.subr.bf16.mxu0 0
    %1464 = vmatpush1.bf16.msra.mxu0 %v1086
    %1465 = vmatprep.subr.bf16.mxu0 0
    %1466 = vmatpush1.bf16.msra.mxu0 %v1087
    %1467 = vmatprep.subr.bf16.mxu0 0
    %1468 = vmatpush1.bf16.msra.mxu0 %v1088
    %1469 = vmatprep.subr.bf16.mxu0 0
    %1470 = vmatpush1.bf16.msra.mxu0 %v1089
    %1471 = vmatprep.subr.bf16.mxu0 0
    %1472 = vmatpush1.bf16.msra.mxu0 %v1090
    %1473 = vmatprep.subr.bf16.mxu0 0
    %1474 = vmatpush1.bf16.msra.mxu0 %v1091
    %1475 = vmatprep.subr.bf16.mxu0 0
    %1476 = vmatpush1.bf16.msra.mxu0 %v1092
    %1477 = vmatprep.subr.bf16.mxu0 0
    %1478 = vmatpush1.bf16.msra.mxu0 %v1093
    %1479 = vmatprep.subr.bf16.mxu0 0
    %1480 = vmatpush1.bf16.msra.mxu0 %v1094
    %1481 = vmatprep.subr.bf16.mxu0 0
    %1482 = vmatpush1.bf16.msra.mxu0 %v1095
    %1483 = vmatprep.subr.bf16.mxu0 0
    %1484 = vmatpush1.bf16.msra.mxu0 %v1096
    %1485 = vmatprep.subr.bf16.mxu0 0
    %1486 = vmatpush1.bf16.msra.mxu0 %v1097
    %1487 = vmatprep.subr.bf16.mxu0 0
    %1488 = vmatpush1.bf16.msra.mxu0 %v1098
    %1489 = vmatprep.subr.bf16.mxu0 0
    %1490 = vmatpush1.bf16.msra.mxu0 %v1099
    %1491 = vmatprep.subr.bf16.mxu0 0
    %1492 = vmatpush1.bf16.msra.mxu0 %v1100
    %1493 = vmatprep.mubr.bf16.mxu0 %v225
    %1494 = vmatmul.mubr.bf16.gmra.mrb[0].mxu0 %v224
    %v1495 = vpop.f32.mrb[0].mxu0
    %v1496 = vadd.f32 %v1456, %v1495
    %v1497 = vpop.f32.mrb[0].mxu0
    %v1498 = vpop.f32.mrb[0].mxu0
    %v1499 = vpop.f32.mrb[0].mxu0
    %1500 = vdwg.mxu0
    %1501 = vmatprep.subr.bf16.mxu0 0
    %1502 = vmatpush1.bf16.msra.mxu0 %v1101
    %1503 = vmatprep.subr.bf16.mxu0 0
    %1504 = vmatpush1.bf16.msra.mxu0 %v1102
    %1505 = vmatprep.subr.bf16.mxu0 0
    %1506 = vmatpush1.bf16.msra.mxu0 %v1103
    %1507 = vmatprep.subr.bf16.mxu0 0
    %1508 = vmatpush1.bf16.msra.mxu0 %v1104
    %1509 = vmatprep.subr.bf16.mxu0 0
    %1510 = vmatpush1.bf16.msra.mxu0 %v1105
    %1511 = vmatprep.subr.bf16.mxu0 0
    %1512 = vmatpush1.bf16.msra.mxu0 %v1106
    %1513 = vmatprep.subr.bf16.mxu0 0
    %1514 = vmatpush1.bf16.msra.mxu0 %v1107
    %1515 = vmatprep.subr.bf16.mxu0 0
    %1516 = vmatpush1.bf16.msra.mxu0 %v1108
    %1517 = vmatprep.subr.bf16.mxu0 0
    %1518 = vmatpush1.bf16.msra.mxu0 %v1109
    %1519 = vmatprep.subr.bf16.mxu0 0
    %1520 = vmatpush1.bf16.msra.mxu0 %v1110
    %1521 = vmatprep.subr.bf16.mxu0 0
    %1522 = vmatpush1.bf16.msra.mxu0 %v1111
    %1523 = vmatprep.subr.bf16.mxu0 0
    %1524 = vmatpush1.bf16.msra.mxu0 %v1112
    %1525 = vmatprep.subr.bf16.mxu0 0
    %1526 = vmatpush1.bf16.msra.mxu0 %v1113
    %1527 = vmatprep.subr.bf16.mxu0 0
    %1528 = vmatpush1.bf16.msra.mxu0 %v1114
    %1529 = vmatprep.subr.bf16.mxu0 0
    %1530 = vmatpush1.bf16.msra.mxu0 %v1115
    %1531 = vmatprep.subr.bf16.mxu0 0
    %1532 = vmatpush1.bf16.msra.mxu0 %v1116
    %1533 = vmatprep.mubr.bf16.mxu0 %v227
    %1534 = vmatmul.mubr.bf16.gmra.mrb[0].mxu0 %v226
    %v1535 = vpop.f32.mrb[0].mxu0
    %v1536 = vadd.f32 %v1496, %v1535
    %v1537 = vpop.f32.mrb[0].mxu0
    %v1538 = vpop.f32.mrb[0].mxu0
    %v1539 = vpop.f32.mrb[0].mxu0
    %1540 = vdwg.mxu0
    %1541 = vmatprep.subr.bf16.mxu0 0
    %1542 = vmatpush1.bf16.msra.mxu0 %v1117
    %1543 = vmatprep.subr.bf16.mxu0 0
    %1544 = vmatpush1.bf16.msra.mxu0 %v1118
    %1545 = vmatprep.subr.bf16.mxu0 0
    %1546 = vmatpush1.bf16.msra.mxu0 %v1119
    %1547 = vmatprep.subr.bf16.mxu0 0
    %1548 = vmatpush1.bf16.msra.mxu0 %v1120
    %1549 = vmatprep.subr.bf16.mxu0 0
    %1550 = vmatpush1.bf16.msra.mxu0 %v1121
    %1551 = vmatprep.subr.bf16.mxu0 0
    %1552 = vmatpush1.bf16.msra.mxu0 %v1122
    %1553 = vmatprep.subr.bf16.mxu0 0
    %1554 = vmatpush1.bf16.msra.mxu0 %v1123
    %1555 = vmatprep.subr.bf16.mxu0 0
    %1556 = vmatpush1.bf16.msra.mxu0 %v1124
    %1557 = vmatprep.subr.bf16.mxu0 0
    %1558 = vmatpush1.bf16.msra.mxu0 %v1125
    %1559 = vmatprep.subr.bf16.mxu0 0
    %1560 = vmatpush1.bf16.msra.mxu0 %v1126
    %1561 = vmatprep.subr.bf16.mxu0 0
    %1562 = vmatpush1.bf16.msra.mxu0 %v1127
    %1563 = vmatprep.subr.bf16.mxu0 0
    %1564 = vmatpush1.bf16.msra.mxu0 %v1128
    %1565 = vmatprep.subr.bf16.mxu0 0
    %1566 = vmatpush1.bf16.msra.mxu0 %v1129
    %1567 = vmatprep.subr.bf16.mxu0 0
    %1568 = vmatpush1.bf16.msra.mxu0 %v1130
    %1569 = vmatprep.subr.bf16.mxu0 0
    %1570 = vmatpush1.bf16.msra.mxu0 %v1131
    %1571 = vmatprep.subr.bf16.mxu0 0
    %1572 = vmatpush1.bf16.msra.mxu0 %v1132
    %1573 = vmatprep.mubr.bf16.mxu0 %v229
    %1574 = vmatmul.mubr.bf16.gmra.mrb[0].mxu0 %v228
    %v1575 = vpop.f32.mrb[0].mxu0
    %v1576 = vadd.f32 %v1536, %v1575
    %v1577 = vpop.f32.mrb[0].mxu0
    %v1578 = vpop.f32.mrb[0].mxu0
    %v1579 = vpop.f32.mrb[0].mxu0
    %1580 = vdwg.mxu0
    %v1581 = vmax.f32 %v1576, 0.0
    %v1582 = vpack.c.bf16 %v1581, %v1581
    %v1583 = vld [vmem:[%s3] sm:$0xf]
    %v1584 = vld [vmem:[%s3 + $0x4] sm:$0xf]
    %v1585 = vld [vmem:[%s3 + $0x8] sm:$0xf]
    %v1586 = vld [vmem:[%s3 + $0xc] sm:$0xf]
    %v1587 = vld [vmem:[%s3 + $0x10] sm:$0xf]
    %v1588 = vld [vmem:[%s3 + $0x14] sm:$0xf]
    %v1589 = vld [vmem:[%s3 + $0x18] sm:$0xf]
    %v1590 = vld [vmem:[%s3 + $0x1c] sm:$0xf]
    %v1591 = vld [vmem:[%s3 + $0x20] sm:$0xf]
    %v1592 = vld [vmem:[%s3 + $0x24] sm:$0xf]
    %v1593 = vld [vmem:[%s3 + $0x28] sm:$0xf]
    %v1594 = vld [vmem:[%s3 + $0x2c] sm:$0xf]
    %v1595 = vld [vmem:[%s3 + $0x30] sm:$0xf]
    %v1596 = vld [vmem:[%s3 + $0x34] sm:$0xf]
    %v1597 = vld [vmem:[%s3 + $0x38] sm:$0xf]
    %v1598 = vld [vmem:[%s3 + $0x3c] sm:$0xf]
    %v1599 = vld [vmem:[%s4] sm:$0x1]
    %v1601 = vlaneseq
    %v1602 = vshrl.u32 %v1601, 7
    %v1603 = vsub.s32 0, %v1602
    %v1604 = vrot.slane %v1599, %v1603
    %v1622 = vunpack.c.l.b16 %v1583
    %v1623 = vunpack.c.l.b16 %v1584
    %v1624 = vunpack.c.l.b16 %v1585
    %v1625 = vunpack.c.l.b16 %v1586
    %v1626 = vunpack.c.l.b16 %v1587
    %v1627 = vunpack.c.l.b16 %v1588
    %v1628 = vunpack.c.l.b16 %v1589
    %v1629 = vunpack.c.l.b16 %v1590
    %v1630 = vunpack.c.l.b16 %v1591
    %v1631 = vunpack.c.l.b16 %v1592
    %v1632 = vunpack.c.l.b16 %v1593
    %v1633 = vunpack.c.l.b16 %v1594
    %v1634 = vunpack.c.l.b16 %v1595
    %v1635 = vunpack.c.l.b16 %v1596
    %v1636 = vunpack.c.l.b16 %v1597
    %v1637 = vunpack.c.l.b16 %v1598
    %v1638 = vpack.c.b16 %v1623, %v1622
    %v1639 = vpack.c.b16 %v1625, %v1624
    %v1640 = vpack.c.b16 %v1627, %v1626
    %v1641 = vpack.c.b16 %v1629, %v1628
    %v1642 = vpack.c.b16 %v1631, %v1630
    %v1643 = vpack.c.b16 %v1633, %v1632
    %v1644 = vpack.c.b16 %v1635, %v1634
    %v1645 = vpack.c.b16 %v1637, %v1636
    %1654 = vmatprep.subr.bf16.mxu0 0
    %1655 = vmatpush1.bf16.msra.mxu0 %v1638
    %1656 = vmatprep.subr.bf16.mxu0 0
    %1657 = vmatpush1.bf16.msra.mxu0 %v1639
    %1658 = vmatprep.subr.bf16.mxu0 0
    %1659 = vmatpush1.bf16.msra.mxu0 %v1640
    %1660 = vmatprep.subr.bf16.mxu0 0
    %1661 = vmatpush1.bf16.msra.mxu0 %v1641
    %1662 = vmatprep.subr.bf16.mxu0 0
    %1663 = vmatpush1.bf16.msra.mxu0 %v1642
    %1664 = vmatprep.subr.bf16.mxu0 0
    %1665 = vmatpush1.bf16.msra.mxu0 %v1643
    %1666 = vmatprep.subr.bf16.mxu0 0
    %1667 = vmatpush1.bf16.msra.mxu0 %v1644
    %1668 = vmatprep.subr.bf16.mxu0 0
    %1669 = vmatpush1.bf16.msra.mxu0 %v1645
    %1670 = vmatprep.subr.bf16.mxu0 0
    %1671 = vmatpush1.bf16.msra.mxu0 0
    %1672 = vmatprep.subr.bf16.mxu0 0
    %1673 = vmatpush1.bf16.msra.mxu0 0
    %1674 = vmatprep.subr.bf16.mxu0 0
    %1675 = vmatpush1.bf16.msra.mxu0 0
    %1676 = vmatprep.subr.bf16.mxu0 0
    %1677 = vmatpush1.bf16.msra.mxu0 0
    %1678 = vmatprep.subr.bf16.mxu0 0
    %1679 = vmatpush1.bf16.msra.mxu0 0
    %1680 = vmatprep.subr.bf16.mxu0 0
    %1681 = vmatpush1.bf16.msra.mxu0 0
    %1682 = vmatprep.subr.bf16.mxu0 0
    %1683 = vmatpush1.bf16.msra.mxu0 0
    %1684 = vmatprep.subr.bf16.mxu0 0
    %1685 = vmatpush1.bf16.msra.mxu0 0
    %1686 = vmatprep.mubr.bf16.mxu0 0
    %1687 = vmatmul.mubr.bf16.gmra.mrb[0].mxu0 %v1582
    %v1688 = vpop.f32.mrb[0].mxu0
    %v1689 = vadd.f32 %v1604, %v1688
    %v1690 = vpop.f32.mrb[0].mxu0
    %v1691 = vpop.f32.mrb[0].mxu0
    %v1692 = vpop.f32.mrb[0].mxu0
    %1693 = vdwg.mxu0
    %1694 = vmax.xlane.f32.xlu0 %v1689
    %v1695 = vpop.xlane.xlu0 %1694
    %v1696 = vsub.f32 %v1689, %v1695
    %v1697 = vmul.f32 %v1696, 1.442695
    %v1698 = vpow.pop %v1697
    %1699 = vadd.xlane.f32.xlu0 %v1698
    %v1700 = vpop.xlane.xlu0 %1699
    %v1701 = vrcp.pop %v1700
    %v1702 = vmul.f32 %v1698, %v1701
    %vm1703 = vcmask 48128
    %1704 = vst.msk [vmem:[#allocation2] sm:$0xff] %vm1703, %v1702
    // Predicated region
    $region22: #{fullyconnected_forward.1} parent=1 // pred_check
      _
    $region23: #{fullyconnected_forward.1} parent=1 // pred_check_branch
      %1706 = sbr.rel (0) target = $region25
    $region24: #{fullyconnected_forward.1} parent=1 // pred_region
      %s1708 = ssub.s32 128, 32
      %1709 = vsyncadd [#allocation3], %s1708
      %s1710 = sshll.u32 [#allocation2], 4
      %s1711 = int_to_ptr.vmem [resolvable:$true] %s1710
      %1716 = dma.vmem_to_hbm [thread:$0]  %s1711, 32, %s5, [#allocation3], 32, 32, 2
    $region25: #{fullyconnected_forward.1} parent=1 // pred_fallthru
      _
    // Predicated region
    $region26: #{fullyconnected_forward.1} parent=1 // pred_check
      _
    $region27: #{fullyconnected_forward.1} parent=1 // pred_check_branch
      %1718 = sbr.rel (0) target = $region29
    $region28: #{fullyconnected_forward.1} parent=1 // pred_region
      %1719 = dma.done [#allocation3], 128
    $region29: #{fullyconnected_forward.1} parent=1 // pred_fallthru
      _
    %1720 = vsyncpa [#allocation3], 1

</llo_original>
